<compile_context>
chip_gen: v7x
topology: tpu7x:2x2x1
jax: 0.10.0
libtpu: 0.0.40
codegen_flags: <defaults>
</compile_context>

<pallas_src>
import jax
import jax.numpy as jnp
from jax.experimental import pallas as pl
from jax.experimental.pallas import tpu as pltpu


def _round_up(x, m):
    return (x + m - 1) // m * m


# ----------------------------------------------------------------------------
# Kernel 1: bidirectional L1 NN, tiled over both the p_i (N) and p_j (M) axes
# ----------------------------------------------------------------------------
def knn_l1_kernel(pi_ref, pj_ref, chamx_ref, idxx_ref, chamy_ref):
    # pi_ref:    (3, TN)  i-tile of p_i, transposed so i sits on the lane axis
    # pj_ref:    (TM, 3)  j-tile of p_j (coords on the padded lane axis)
    # chamx_ref: (1, TN)  running min_j |p_i - p_j|_1   (resident across the m axis)
    # idxx_ref:  (1, TN)  running argmin (first hit)    (resident across the m axis)
    # chamy_ref: (TM, 1)  min over THIS i-tile of |p_i - p_j|_1, written once per step
    m = pl.program_id(2)
    TM = pj_ref.shape[0]

    @pl.when(m == 0)
    def _():
        chamx_ref[...] = jnp.full_like(chamx_ref, jnp.inf)
        idxx_ref[...] = jnp.zeros_like(idxx_ref)

    # L1 distance tile D[j, i] = sum_d |p_j[j, d] - p_i[d, i]|   (knn norm=1).
    D = jnp.abs(pj_ref[:, 0:1] - pi_ref[0:1, :])
    D = D + jnp.abs(pj_ref[:, 1:2] - pi_ref[1:2, :])
    D = D + jnp.abs(pj_ref[:, 2:3] - pi_ref[2:3, :])            # (TM, TN)

    # cham_y partial for this (i-tile, j-tile): min over i (lane reduction) -> (TM, 1).
    chamy_ref[...] = jnp.min(D, axis=1, keepdims=True)

    # Per-p_i min / first-hit argmin over this tile's j: sublane reductions -> (1, TN).
    # row_iota is built at (TM, 1) and broadcast inside the select (no full-size iota).
    tile_min = jnp.min(D, axis=0, keepdims=True)                 # (1, TN)
    row_iota = jax.lax.broadcasted_iota(jnp.int32, (TM, 1), 0)
    tile_arg = jnp.min(jnp.where(D <= tile_min, row_iota, TM),
                       axis=0, keepdims=True) + m * TM           # (1, TN) global j index

    # Fold into lane-dense resident accumulators (strict '<' keeps the earliest tile on
    # exact ties; within a tile the masked-iota min keeps the lowest index).
    better = tile_min < chamx_ref[...]
    idxx_ref[...] = jnp.where(better, tile_arg, idxx_ref[...])
    chamx_ref[...] = jnp.where(better, tile_min, chamx_ref[...])


# ----------------------------------------------------------------------------
# Kernel 2: CrossEntropy(ignore_index=-1), flat lane-dense pixel tiles
# ----------------------------------------------------------------------------
def ce_ignore_kernel(logits_ref, tgt_ref, total_ref, count_ref, acc_ref):
    # logits_ref: (C, TP)  native-dtype logits tile (channel planes, lane-dense pixels)
    # tgt_ref:    (1, TP)  int32 targets, -1 = ignore
    # total_ref / count_ref: (1, 1) per-batch outputs, resident across the pixel axis
    # acc_ref:    (2, TP)  lane-dense scratch accumulator (row 0: loss, row 1: count)
    p = pl.program_id(1)

    @pl.when(p == 0)
    def _():
        acc_ref[...] = jnp.zeros_like(acc_ref)

    tgt = tgt_ref[...]                                           # (1, TP)
    C = logits_ref.shape[0]

    planes = [logits_ref[0:1, :].astype(jnp.float32)]            # C small (e.g. 4)
    mx = planes[0]
    for c in range(1, C):
        xc = logits_ref[c:c + 1, :].astype(jnp.float32)
        planes.append(xc)
        mx = jnp.maximum(mx, xc)

    sexp = jnp.exp(planes[0] - mx)
    picked = jnp.where(tgt == 0, planes[0], 0.0)
    for c in range(1, C):
        sexp = sexp + jnp.exp(planes[c] - mx)
        picked = picked + jnp.where(tgt == c, planes[c], 0.0)

    lse = mx + jnp.log(sexp)                                     # (1, TP)
    valid = (tgt != -1).astype(jnp.float32)

    acc_ref[0:1, :] += (lse - picked) * valid
    acc_ref[1:2, :] += valid

    @pl.when(p == pl.num_programs(1) - 1)
    def _():
        total_ref[0, 0] = jnp.sum(acc_ref[0:1, :])
        count_ref[0, 0] = jnp.sum(acc_ref[1:2, :])


# ----------------------------------------------------------------------------
# Wrapper (glue in plain JAX)
# ----------------------------------------------------------------------------
def artificial_label_loss(p_i, mos, p_j, error_p_i_flow, nearest_flow, cfg):
    BS, N, _ = p_i.shape
    M = p_j.shape[1]
    G = cfg['grid_size']
    C = mos.shape[1]

    # Reference adds cham_x + cham_y elementwise by index -> requires N == M.
    assert N == M, "Artificial_label_loss assumes p_i and p_j have the same point count"

    p_i = p_i.astype(jnp.float32)
    p_j = p_j.astype(jnp.float32)

    # ---- kernel 1 tiling: i on lanes (TN <= 512, mult of 128), j on sublanes (TM <= 1024)
    TN = min(512, _round_up(N, 128))
    N_pad = _round_up(N, TN)
    TM = min(1024, _round_up(M, 8))
    M_pad = _round_up(M, TM)
    num_n = N_pad // TN
    num_m = M_pad // TM

    # Pad with a huge-but-finite coordinate: padded points have huge L1 distance to any
    # real point, so they never win a min/argmin; their own rows/lanes are sliced off.
    PAD = 1e30
    p_i_p = p_i if N_pad == N else jnp.pad(
        p_i, ((0, 0), (0, N_pad - N), (0, 0)), constant_values=PAD)
    p_j_p = p_j if M_pad == M else jnp.pad(
        p_j, ((0, 0), (0, M_pad - M), (0, 0)), constant_values=PAD)
    p_i_t = jnp.transpose(p_i_p, (0, 2, 1))                      # (BS, 3, N_pad)

    cham_x, idx_x, cham_y = pl.pallas_call(
        knn_l1_kernel,
        grid=(BS, num_n, num_m),
        in_specs=[
            pl.BlockSpec((None, 3, TN), lambda b, n, m: (b, 0, n)),
            pl.BlockSpec((None, TM, 3), lambda b, n, m: (b, m, 0)),
        ],
        out_specs=[
            pl.BlockSpec((None, 1, TN), lambda b, n, m: (b, 0, n)),     # resident over m
            pl.BlockSpec((None, 1, TN), lambda b, n, m: (b, 0, n)),     # resident over m
            pl.BlockSpec((None, None, TM, 1), lambda b, n, m: (b, n, m, 0)),
        ],
        out_shape=[
            jax.ShapeDtypeStruct((BS, 1, N_pad), jnp.float32),
            jax.ShapeDtypeStruct((BS, 1, N_pad), jnp.int32),
            jax.ShapeDtypeStruct((BS, num_n, M_pad, 1), jnp.float32),   # per-i-tile partials
        ],
        compiler_params=pltpu.CompilerParams(
            dimension_semantics=("parallel", "parallel", "arbitrary"),
            vmem_limit_bytes=32 * 1024 * 1024),
    )(p_i_t, p_j_p)

    cham_x = cham_x[:, 0, :N]                                    # (BS, N)
    idx_x = idx_x[:, 0, :N]                                      # (BS, N)
    cham_y = jnp.min(cham_y, axis=1)[:, :M, 0]                   # reduce i-tile partials

    # NN_loss(reduction='none') rigid error + dynamic-state label selection.
    rigid = 0.5 * (cham_x + cham_y)
    dyn = error_p_i_flow.astype(jnp.float32) > rigid
    art_idx = jnp.where(dyn, nearest_flow[..., 0].astype(jnp.int32), idx_x)
    art_lab = dyn.astype(jnp.int32)

    # p_j_by_nn = stack([p_j[b, art_idx[b]] for b in range(BS)])
    p_j_by_nn = jax.vmap(lambda pts, idx: pts[idx])(p_j, art_idx)        # (BS, N, 3)

    # construct_batched_cuda_grid
    # TODO(synk): data-dependent BEV scatter has no clean Pallas equivalent; done with
    # jnp .at[].set (duplicate / out-of-range cells follow XLA scatter semantics).
    cell_size = abs(2.0 * cfg['x_min'] / G)
    shift = jnp.array([cfg['x_min'], cfg['y_min']], dtype=jnp.float32)
    feat_ind = ((p_j_by_nn[:, :, :2] - shift) / cell_size).astype(jnp.int32)  # trunc = .long()
    bs_ind = jnp.repeat(jnp.arange(BS), N)
    fi_flat = feat_ind.reshape(BS * N, 2)
    label_grid = jnp.full((BS, G, G), -1, dtype=jnp.int32)
    label_grid = label_grid.at[bs_ind, fi_flat[:, 0], fi_flat[:, 1]].set(art_lab.reshape(-1))

    # ---- kernel 2: CE(mos NCHW, label_grid), ignore_index=-1, mean reduction
    P = G * G
    TP = min(2048, _round_up(P, 128))
    P_pad = _round_up(P, TP)
    num_p = P_pad // TP

    mos_flat = mos.reshape(BS, C, P)                  # native dtype, free HBM reshape
    tgt_flat = label_grid.reshape(BS, 1, P)
    if P_pad != P:
        mos_flat = jnp.pad(mos_flat, ((0, 0), (0, 0), (0, P_pad - P)))
        tgt_flat = jnp.pad(tgt_flat, ((0, 0), (0, 0), (0, P_pad - P)), constant_values=-1)

    total, count = pl.pallas_call(
        ce_ignore_kernel,
        grid=(BS, num_p),
        in_specs=[
            pl.BlockSpec((None, C, TP), lambda b, p: (b, 0, p)),
            pl.BlockSpec((None, 1, TP), lambda b, p: (b, 0, p)),
        ],
        out_specs=[
            pl.BlockSpec((None, 1, 1), lambda b, p: (b, 0, 0)),  # per-batch partials
            pl.BlockSpec((None, 1, 1), lambda b, p: (b, 0, 0)),
        ],
        out_shape=[
            jax.ShapeDtypeStruct((BS, 1, 1), jnp.float32),
            jax.ShapeDtypeStruct((BS, 1, 1), jnp.float32),
        ],
        scratch_shapes=[pltpu.VMEM((2, TP), jnp.float32)],
        compiler_params=pltpu.CompilerParams(
            dimension_semantics=("parallel", "arbitrary")),
    )(mos_flat, tgt_flat)

    total = jnp.sum(total)
    count = jnp.sum(count)
    # Guarded division (all-ignored grid -> nan, matching PyTorch CE semantics).
    return jnp.where(count > 0, total / jnp.maximum(count, 1.0), jnp.float32(jnp.nan))


if __name__ == "__main__":
    key = jax.random.PRNGKey(0)
    BS, N, M, C, G = 2, 128, 128, 4, 16
    cfg = {'grid_size': G, 'x_min': -8.0, 'y_min': -8.0}

    k1, k2, k3, k4, k5 = jax.random.split(key, 5)
    p_i = jax.random.uniform(k1, (BS, N, 3), jnp.float32, -7.0, 7.0)
    p_j = jax.random.uniform(k2, (BS, M, 3), jnp.float32, -7.0, 7.0)
    error_p_i_flow = jax.random.uniform(k3, (BS, N), jnp.float32, 0.0, 2.0)
    nearest_flow = jax.random.randint(k4, (BS, N, 1), 0, M, jnp.int32)
    mos = jax.random.normal(k5, (BS, C, G, G), jnp.float32)   # NCHW logits (module has no params)

    loss = artificial_label_loss(p_i, mos, p_j, error_p_i_flow, nearest_flow, cfg)
    jax.block_until_ready(loss)
    assert jnp.isfinite(loss)
    print("KERNEL_OK")
</pallas_src>

<mosaic_0001>
module attributes {stable_mosaic.version = 11 : i64} {
  func.func @knn_l1_kernel(%arg0: i32, %arg1: i32, %arg2: i32, %arg3: memref<1x3x128xf32, #tpu.memory_space<vmem>>, %arg4: memref<1x128x3xf32, #tpu.memory_space<vmem>>, %arg5: memref<1x1x128xf32, #tpu.memory_space<vmem>>, %arg6: memref<1x1x128xi32, #tpu.memory_space<vmem>>, %arg7: memref<1x1x128x1xf32, #tpu.memory_space<vmem>>) attributes {dimension_semantics = [#tpu.dimension_semantics<parallel>, #tpu.dimension_semantics<parallel>, #tpu.dimension_semantics<arbitrary>], iteration_bounds = array<i64: 2, 1, 1>, scalar_prefetch = 0 : i64, scratch_operands = 0 : i64, tpu.core_type = #tpu.core_type<tc>, window_params = [{transform_indices = @transform_0, window_bounds = array<i64: 1, 3, 128>}, {transform_indices = @transform_1, window_bounds = array<i64: 1, 128, 3>}, {transform_indices = @transform_2, window_bounds = array<i64: 1, 1, 128>}, {transform_indices = @transform_3, window_bounds = array<i64: 1, 1, 128>}, {transform_indices = @transform_4, window_bounds = array<i64: 1, 1, 128, 1>}]} {
    %c0_i32 = arith.constant 0 : i32
    %0 = arith.cmpi eq, %arg2, %c0_i32 : i32
    %1 = arith.extui %0 : i1 to i32
    %c0_i32_0 = arith.constant 0 : i32
    %2 = arith.cmpi ne, %1, %c0_i32_0 : i32
    scf.if %2 {
      %cst_38 = arith.constant 0x7F800000 : f32
      %63 = vector.broadcast %cst_38 : f32 to vector<1x128xf32>
      %c0_39 = arith.constant 0 : index
      %c0_40 = arith.constant 0 : index
      %c0_41 = arith.constant 0 : index
      %64 = vector.load %arg5[%c0_39, %c0_40, %c0_41] : memref<1x1x128xf32, #tpu.memory_space<vmem>>, vector<1x1x128xf32>
      %65 = vector.shape_cast %64 : vector<1x1x128xf32> to vector<1x128xf32>
      %66 = vector.shape_cast %63 : vector<1x128xf32> to vector<1x1x128xf32>
      tpu.vector_store %arg5[%c0_39, %c0_40, %c0_41], %66 {strides = array<i32>} : memref<1x1x128xf32, #tpu.memory_space<vmem>>, vector<1x1x128xf32>,
      %c0_i32_42 = arith.constant 0 : i32
      %67 = vector.broadcast %c0_i32_42 : i32 to vector<1x128xi32>
      %c0_43 = arith.constant 0 : index
      %c0_44 = arith.constant 0 : index
      %c0_45 = arith.constant 0 : index
      %68 = vector.load %arg6[%c0_43, %c0_44, %c0_45] : memref<1x1x128xi32, #tpu.memory_space<vmem>>, vector<1x1x128xi32>
      %69 = vector.shape_cast %68 : vector<1x1x128xi32> to vector<1x128xi32>
      %70 = vector.shape_cast %67 : vector<1x128xi32> to vector<1x1x128xi32>
      tpu.vector_store %arg6[%c0_43, %c0_44, %c0_45], %70 {strides = array<i32>} : memref<1x1x128xi32, #tpu.memory_space<vmem>>, vector<1x1x128xi32>,
    } else {
    }
    %c0 = arith.constant 0 : index
    %c0_1 = arith.constant 0 : index
    %c0_2 = arith.constant 0 : index
    %3 = vector.load %arg4[%c0, %c0_1, %c0_2] : memref<1x128x3xf32, #tpu.memory_space<vmem>>, vector<1x128x1xf32>
    %4 = vector.shape_cast %3 : vector<1x128x1xf32> to vector<128x1xf32>
    %c0_3 = arith.constant 0 : index
    %c0_4 = arith.constant 0 : index
    %c0_5 = arith.constant 0 : index
    %5 = vector.load %arg3[%c0_3, %c0_4, %c0_5] : memref<1x3x128xf32, #tpu.memory_space<vmem>>, vector<1x1x128xf32>
    %6 = vector.shape_cast %5 : vector<1x1x128xf32> to vector<1x128xf32>
    %7 = vector.broadcast %4 : vector<128x1xf32> to vector<128x128xf32>
    %8 = vector.broadcast %6 : vector<1x128xf32> to vector<128x128xf32>
    %9 = arith.subf %7, %8 : vector<128x128xf32>
    %10 = math.absf %9 : vector<128x128xf32>
    %c0_6 = arith.constant 0 : index
    %c0_7 = arith.constant 0 : index
    %c1 = arith.constant 1 : index
    %11 = vector.load %arg4[%c0_6, %c0_7, %c1] : memref<1x128x3xf32, #tpu.memory_space<vmem>>, vector<1x128x1xf32>
    %12 = vector.shape_cast %11 : vector<1x128x1xf32> to vector<128x1xf32>
    %c0_8 = arith.constant 0 : index
    %c1_9 = arith.constant 1 : index
    %c0_10 = arith.constant 0 : index
    %13 = vector.load %arg3[%c0_8, %c1_9, %c0_10] : memref<1x3x128xf32, #tpu.memory_space<vmem>>, vector<1x1x128xf32>
    %14 = vector.shape_cast %13 : vector<1x1x128xf32> to vector<1x128xf32>
    %15 = vector.broadcast %12 : vector<128x1xf32> to vector<128x128xf32>
    %16 = vector.broadcast %14 : vector<1x128xf32> to vector<128x128xf32>
    %17 = arith.subf %15, %16 : vector<128x128xf32>
    %18 = math.absf %17 : vector<128x128xf32>
    %19 = arith.addf %10, %18 : vector<128x128xf32>
    %c0_11 = arith.constant 0 : index
    %c0_12 = arith.constant 0 : index
    %c2 = arith.constant 2 : index
    %20 = vector.load %arg4[%c0_11, %c0_12, %c2] : memref<1x128x3xf32, #tpu.memory_space<vmem>>, vector<1x128x1xf32>
    %21 = vector.shape_cast %20 : vector<1x128x1xf32> to vector<128x1xf32>
    %c0_13 = arith.constant 0 : index
    %c2_14 = arith.constant 2 : index
    %c0_15 = arith.constant 0 : index
    %22 = vector.load %arg3[%c0_13, %c2_14, %c0_15] : memref<1x3x128xf32, #tpu.memory_space<vmem>>, vector<1x1x128xf32>
    %23 = vector.shape_cast %22 : vector<1x1x128xf32> to vector<1x128xf32>
    %24 = vector.broadcast %21 : vector<128x1xf32> to vector<128x128xf32>
    %25 = vector.broadcast %23 : vector<1x128xf32> to vector<128x128xf32>
    %26 = arith.subf %24, %25 : vector<128x128xf32>
    %27 = math.absf %26 : vector<128x128xf32>
    %28 = arith.addf %19, %27 : vector<128x128xf32>
    %cst = arith.constant dense<0x7F800000> : vector<128xf32>
    %29 = vector.multi_reduction <minimumf>, %28, %cst [1] : vector<128x128xf32> to vector<128xf32>
    %30 = vector.shape_cast %29 : vector<128xf32> to vector<128x1xf32>
    %c0_16 = arith.constant 0 : index
    %c0_17 = arith.constant 0 : index
    %c0_18 = arith.constant 0 : index
    %c0_19 = arith.constant 0 : index
    %31 = vector.load %arg7[%c0_16, %c0_17, %c0_18, %c0_19] : memref<1x1x128x1xf32, #tpu.memory_space<vmem>>, vector<1x1x128x1xf32>
    %32 = vector.shape_cast %31 : vector<1x1x128x1xf32> to vector<128x1xf32>
    %33 = vector.shape_cast %30 : vector<128x1xf32> to vector<1x1x128x1xf32>
    tpu.vector_store %arg7[%c0_16, %c0_17, %c0_18, %c0_19], %33 {strides = array<i32>} : memref<1x1x128x1xf32, #tpu.memory_space<vmem>>, vector<1x1x128x1xf32>,
    %cst_20 = arith.constant dense<0x7F800000> : vector<128xf32>
    %34 = vector.multi_reduction <minimumf>, %28, %cst_20 [0] : vector<128x128xf32> to vector<128xf32>
    %35 = vector.shape_cast %34 : vector<128xf32> to vector<1x128xf32>
    %36 = tpu.iota {dimensions = array<i32: 0>} : vector<128x1xi32>
    %37 = vector.broadcast %35 : vector<1x128xf32> to vector<128x128xf32>
    %38 = arith.cmpf ole, %28, %37 : vector<128x128xf32>
    %c128_i32 = arith.constant 128 : i32
    %39 = vector.shape_cast %36 : vector<128x1xi32> to vector<128x1xi32>
    %40 = vector.broadcast %39 : vector<128x1xi32> to vector<128x128xi32>
    %41 = vector.broadcast %c128_i32 : i32 to vector<128x128xi32>
    %42 = arith.select %38, %40, %41 : vector<128x128xi1>, vector<128x128xi32>
    %cst_21 = arith.constant dense<2147483647> : vector<128xi32>
    %43 = vector.multi_reduction <minsi>, %42, %cst_21 [0] : vector<128x128xi32> to vector<128xi32>
    %44 = vector.shape_cast %43 : vector<128xi32> to vector<1x128xi32>
    %c128_i32_22 = arith.constant 128 : i32
    %45 = arith.muli %arg2, %c128_i32_22 : i32
    %46 = vector.broadcast %45 : i32 to vector<1x128xi32>
    %47 = arith.addi %44, %46 : vector<1x128xi32>
    %c0_23 = arith.constant 0 : index
    %c0_24 = arith.constant 0 : index
    %c0_25 = arith.constant 0 : index
    %48 = vector.load %arg5[%c0_23, %c0_24, %c0_25] : memref<1x1x128xf32, #tpu.memory_space<vmem>>, vector<1x1x128xf32>
    %49 = vector.shape_cast %48 : vector<1x1x128xf32> to vector<1x128xf32>
    %50 = arith.cmpf olt, %35, %49 : vector<1x128xf32>
    %c0_26 = arith.constant 0 : index
    %c0_27 = arith.constant 0 : index
    %c0_28 = arith.constant 0 : index
    %51 = vector.load %arg6[%c0_26, %c0_27, %c0_28] : memref<1x1x128xi32, #tpu.memory_space<vmem>>, vector<1x1x128xi32>
    %52 = vector.shape_cast %51 : vector<1x1x128xi32> to vector<1x128xi32>
    %53 = arith.select %50, %47, %52 : vector<1x128xi1>, vector<1x128xi32>
    %c0_29 = arith.constant 0 : index
    %c0_30 = arith.constant 0 : index
    %c0_31 = arith.constant 0 : index
    %54 = vector.load %arg6[%c0_29, %c0_30, %c0_31] : memref<1x1x128xi32, #tpu.memory_space<vmem>>, vector<1x1x128xi32>
    %55 = vector.shape_cast %54 : vector<1x1x128xi32> to vector<1x128xi32>
    %56 = vector.shape_cast %53 : vector<1x128xi32> to vector<1x1x128xi32>
    tpu.vector_store %arg6[%c0_29, %c0_30, %c0_31], %56 {strides = array<i32>} : memref<1x1x128xi32, #tpu.memory_space<vmem>>, vector<1x1x128xi32>,
    %c0_32 = arith.constant 0 : index
    %c0_33 = arith.constant 0 : index
    %c0_34 = arith.constant 0 : index
    %57 = vector.load %arg5[%c0_32, %c0_33, %c0_34] : memref<1x1x128xf32, #tpu.memory_space<vmem>>, vector<1x1x128xf32>
    %58 = vector.shape_cast %57 : vector<1x1x128xf32> to vector<1x128xf32>
    %59 = arith.select %50, %35, %58 : vector<1x128xi1>, vector<1x128xf32>
    %c0_35 = arith.constant 0 : index
    %c0_36 = arith.constant 0 : index
    %c0_37 = arith.constant 0 : index
    %60 = vector.load %arg5[%c0_35, %c0_36, %c0_37] : memref<1x1x128xf32, #tpu.memory_space<vmem>>, vector<1x1x128xf32>
    %61 = vector.shape_cast %60 : vector<1x1x128xf32> to vector<1x128xf32>
    %62 = vector.shape_cast %59 : vector<1x128xf32> to vector<1x1x128xf32>
    tpu.vector_store %arg5[%c0_35, %c0_36, %c0_37], %62 {strides = array<i32>} : memref<1x1x128xf32, #tpu.memory_space<vmem>>, vector<1x1x128xf32>,
    return
  }
  func.func @transform_0(%arg0: i32, %arg1: i32, %arg2: i32) -> (i32, i32, i32) {
    %c0_i32 = arith.constant 0 : i32
    %c0_i32_0 = arith.constant 0 : i32
    return %arg0, %c0_i32, %arg1 : i32, i32, i32
  }
  func.func @transform_1(%arg0: i32, %arg1: i32, %arg2: i32) -> (i32, i32, i32) {
    %c0_i32 = arith.constant 0 : i32
    %c0_i32_0 = arith.constant 0 : i32
    return %arg0, %arg2, %c0_i32 : i32, i32, i32
  }
  func.func @transform_2(%arg0: i32, %arg1: i32, %arg2: i32) -> (i32, i32, i32) {
    %c0_i32 = arith.constant 0 : i32
    %c0_i32_0 = arith.constant 0 : i32
    return %arg0, %c0_i32, %arg1 : i32, i32, i32
  }
  func.func @transform_3(%arg0: i32, %arg1: i32, %arg2: i32) -> (i32, i32, i32) {
    %c0_i32 = arith.constant 0 : i32
    %c0_i32_0 = arith.constant 0 : i32
    return %arg0, %c0_i32, %arg1 : i32, i32, i32
  }
  func.func @transform_4(%arg0: i32, %arg1: i32, %arg2: i32) -> (i32, i32, i32, i32) {
    %c0_i32 = arith.constant 0 : i32
    %c0_i32_0 = arith.constant 0 : i32
    return %arg0, %arg1, %arg2, %c0_i32 : i32, i32, i32, i32
  }
}

</mosaic_0001>

<llo_original>
// kernel: tpu_custom_call.1
$region0: #{tpu_custom_call.1}
  #allocation0 [shape = 'u32[]', space=smem, size = 0x4, offset = 0x4, fixed_abs, tag = 'smem constant byte address 0x4 - core index']
  #allocation1 [shape = 'u32[144,128]{1,0:T(1,128)}', space=vmem, size = 0x12000, scoped, tag = 'internal scratch']
  %s0 = inlined_call_operand.vmem [shape: f32[2,3,128], index: 0, kind: input, shape index: {}]
  %s1 = inlined_call_operand.vmem [shape: f32[2,128,3], index: 1, kind: input, shape index: {}]
  %s2 = inlined_call_operand.hbm [shape: f32[2,1,128], index: 2, kind: output, shape index: {0}]
  %s3 = inlined_call_operand.hbm [shape: s32[2,1,128], index: 3, kind: output, shape index: {1}]
  %s4 = inlined_call_operand.vmem [shape: f32[2,1,128,1], index: 4, kind: output, shape index: {2}]
  %5 = xla_tuple %s2, %s3, %s4
  %s6 = sld [smem:[#allocation0]]
  $region61: #{tpu_custom_call.1} parent=0
    _
  %s8 = ssub.s32 1, %s6
  %s9 = scalar_select 0, %s8, %s6
  $region1: #{tpu_custom_call.1} parent=0
    #allocation2 [shape = 'u8[1024]{0}', space=vmem, size = 0x400, scoped, tag = 'output window, operand 0']
    #allocation3 [shape = 's32[2]{0}', space=sflag, size = 0x8, scoped, tag = 'scoped memory for tpu_custom_call.1']
    #allocation4 [shape = 'u8[1024]{0}', space=vmem, size = 0x400, scoped, tag = 'output window, operand 1']
    #allocation5 [shape = 's32[2]{0}', space=sflag, size = 0x8, scoped, tag = 'scoped memory for tpu_custom_call.1']
    %10 = vsyncpa [#allocation3], 0
    %s11 = scalar_lea.sflag [#allocation3], 1
    %12 = vsyncpa %s11, 0
    %13 = vsyncpa [#allocation5], 0
    %s14 = scalar_lea.sflag [#allocation5], 1
    %15 = vsyncpa %s14, 0
    loop: start=0, step=1, limit=4
    $region2: #{tpu_custom_call.1} parent=1 // loop_pre_header
      _
    $region3: #{tpu_custom_call.1} parent=1 // loop_header
      %s17 = sphi 0, %s21
      %p18 = scmp.ge.s32.totalorder %s17, 4
      %s24 = sphi 0, %s43
      %s25 = sphi 0, %s39
      %s26 = sphi 0, %s35
      %s27 = sphi 0, %s24
      %s28 = sphi 0, %s25
      %s29 = sphi 0, %s26
      %s30 = sphi 0, %s27
      %s31 = sphi 0, %s28
      %s32 = sphi 0, %s29
      %s48 = sphi 0, %s50
      %s51 = sphi 0, %s48
      %s52 = sphi 0, %s51
      %s68 = sphi 0, %s52
      %s76 = sphi 0, %s78
      %s79 = sphi 0, %s76
      %s80 = sphi 0, %s79
      %s96 = sphi 0, %s80
      %s104 = sphi 0, %s106
      %s107 = sphi 0, %s104
      %s108 = sphi 0, %s107
      %s124 = sphi 0, %s108
      %s132 = sphi 0, %s134
      %s135 = sphi 0, %s132
      %s136 = sphi 0, %s135
      %s152 = sphi 0, %s136
      %s162 = sphi 0, %s164
      %s165 = sphi 0, %s162
      %s166 = sphi 0, %s165
      %s182 = sphi 0, %s166
    $region4: #{tpu_custom_call.1} parent=1 // loop_header_branch
      %20 = sbr.rel (%p18) target = $region8
    $region5: #{tpu_custom_call.1} parent=1 // loop_body
      %s22 = ssub.s32 %s17, 1
      %s23 = ssub.s32 %s17, 2
      %s33 = sadd.s32 1, %s26
      %p34 = scmp.ge.s32.totalorder %s33, 1
      %s35 = scalar_select %p34, 0, %s33
      %s36 = sadd.s32 1, %s25
      %s37 = scalar_select %p34, %s36, %s25
      %p38 = scmp.ge.s32.totalorder %s37, 1
      %s39 = scalar_select %p38, 0, %s37
      %s40 = sadd.s32 1, %s24
      %s41 = scalar_select %p38, %s40, %s24
      %p42 = scmp.ge.s32.totalorder %s41, 2
      %s43 = scalar_select %p42, 0, %s41
      %s44 = ssub.s32 %s24, %s43
      %s45 = ssub.s32 %s25, %s39
      %s46 = sor.u32 %s44, %s45
      %p47 = scmp.eq.s32.totalorder %s46, 0
      %s49 = sadd.s32 %s48, 1
      %s50 = scalar_select %p47, %s48, %s49
      %p53 = pneg %p47
      %p54 = scmp.eq.s32.totalorder %s17, 1
      %p55 = por %p53, %p54
      %p56 = scmp.ne.s32.totalorder %s48, %s51
      %p57 = scmp.eq.s32.totalorder %s17, 0
      %p58 = por %p56, %p57
      %p59 = scmp.ne.s32.totalorder %s48, %s51
      %p60 = scmp.eq.s32.totalorder %s22, 1
      %p61 = por %p59, %p60
      %p62 = scmp.ne.s32.totalorder %s51, %s52
      %p63 = scmp.eq.s32.totalorder %s22, 0
      %p64 = por %p62, %p63
      %p65 = scmp.ne.s32.totalorder %s51, %s52
      %p66 = scmp.eq.s32.totalorder %s23, 1
      %p67 = por %p65, %p66
      %p69 = scmp.ne.s32.totalorder %s52, %s68
      %p70 = scmp.eq.s32.totalorder %s23, 0
      %p71 = por %p69, %p70
      %s72 = ssub.s32 %s24, %s43
      %s73 = ssub.s32 %s26, %s35
      %s74 = sor.u32 %s72, %s73
      %p75 = scmp.eq.s32.totalorder %s74, 0
      %s77 = sadd.s32 %s76, 1
      %s78 = scalar_select %p75, %s76, %s77
      %p81 = pneg %p75
      %p82 = scmp.eq.s32.totalorder %s17, 1
      %p83 = por %p81, %p82
      %p84 = scmp.ne.s32.totalorder %s76, %s79
      %p85 = scmp.eq.s32.totalorder %s17, 0
      %p86 = por %p84, %p85
      %p87 = scmp.ne.s32.totalorder %s76, %s79
      %p88 = scmp.eq.s32.totalorder %s22, 1
      %p89 = por %p87, %p88
      %p90 = scmp.ne.s32.totalorder %s79, %s80
      %p91 = scmp.eq.s32.totalorder %s22, 0
      %p92 = por %p90, %p91
      %p93 = scmp.ne.s32.totalorder %s79, %s80
      %p94 = scmp.eq.s32.totalorder %s23, 1
      %p95 = por %p93, %p94
      %p97 = scmp.ne.s32.totalorder %s80, %s96
      %p98 = scmp.eq.s32.totalorder %s23, 0
      %p99 = por %p97, %p98
      %s100 = ssub.s32 %s24, %s43
      %s101 = ssub.s32 %s25, %s39
      %s102 = sor.u32 %s100, %s101
      %p103 = scmp.eq.s32.totalorder %s102, 0
      %s105 = sadd.s32 %s104, 1
      %s106 = scalar_select %p103, %s104, %s105
      %p109 = pneg %p103
      %p110 = scmp.eq.s32.totalorder %s17, 1
      %p111 = por %p109, %p110
      %p112 = scmp.ne.s32.totalorder %s104, %s107
      %p113 = scmp.eq.s32.totalorder %s17, 0
      %p114 = por %p112, %p113
      %p115 = scmp.ne.s32.totalorder %s104, %s107
      %p116 = scmp.eq.s32.totalorder %s22, 1
      %p117 = por %p115, %p116
      %p118 = scmp.ne.s32.totalorder %s107, %s108
      %p119 = scmp.eq.s32.totalorder %s22, 0
      %p120 = por %p118, %p119
      %p121 = scmp.ne.s32.totalorder %s107, %s108
      %p122 = scmp.eq.s32.totalorder %s23, 1
      %p123 = por %p121, %p122
      %p125 = scmp.ne.s32.totalorder %s108, %s124
      %p126 = scmp.eq.s32.totalorder %s23, 0
      %p127 = por %p125, %p126
      %s128 = ssub.s32 %s24, %s43
      %s129 = ssub.s32 %s25, %s39
      %s130 = sor.u32 %s128, %s129
      %p131 = scmp.eq.s32.totalorder %s130, 0
      %s133 = sadd.s32 %s132, 1
      %s134 = scalar_select %p131, %s132, %s133
      %p137 = pneg %p131
      %p138 = scmp.eq.s32.totalorder %s17, 1
      %p139 = por %p137, %p138
      %p140 = scmp.ne.s32.totalorder %s132, %s135
      %p141 = scmp.eq.s32.totalorder %s17, 0
      %p142 = por %p140, %p141
      %p143 = scmp.ne.s32.totalorder %s132, %s135
      %p144 = scmp.eq.s32.totalorder %s22, 1
      %p145 = por %p143, %p144
      %p146 = scmp.ne.s32.totalorder %s135, %s136
      %p147 = scmp.eq.s32.totalorder %s22, 0
      %p148 = por %p146, %p147
      %p149 = scmp.ne.s32.totalorder %s135, %s136
      %p150 = scmp.eq.s32.totalorder %s23, 1
      %p151 = por %p149, %p150
      %p153 = scmp.ne.s32.totalorder %s136, %s152
      %p154 = scmp.eq.s32.totalorder %s23, 0
      %p155 = por %p153, %p154
      %s156 = ssub.s32 %s24, %s43
      %s157 = ssub.s32 %s25, %s39
      %s158 = sor.u32 %s156, %s157
      %s159 = ssub.s32 %s26, %s35
      %s160 = sor.u32 %s158, %s159
      %p161 = scmp.eq.s32.totalorder %s160, 0
      %s163 = sadd.s32 %s162, 1
      %s164 = scalar_select %p161, %s162, %s163
      %p167 = pneg %p161
      %p168 = scmp.eq.s32.totalorder %s17, 1
      %p169 = por %p167, %p168
      %p170 = scmp.ne.s32.totalorder %s162, %s165
      %p171 = scmp.eq.s32.totalorder %s17, 0
      %p172 = por %p170, %p171
      %p173 = scmp.ne.s32.totalorder %s162, %s165
      %p174 = scmp.eq.s32.totalorder %s22, 1
      %p175 = por %p173, %p174
      %p176 = scmp.ne.s32.totalorder %s165, %s166
      %p177 = scmp.eq.s32.totalorder %s22, 0
      %p178 = por %p176, %p177
      %p179 = scmp.ne.s32.totalorder %s165, %s166
      %p180 = scmp.eq.s32.totalorder %s23, 1
      %p181 = por %p179, %p180
      %p183 = scmp.ne.s32.totalorder %s166, %s182
      %p184 = scmp.eq.s32.totalorder %s23, 0
      %p185 = por %p183, %p184
      %p186 = scmp.le.s32.totalorder 1, %s17
      %p187 = scmp.lt.s32.totalorder %s17, 3
      %p188 = pnand %p186, %p187
      %p189 = pneg %p188
      // Predicated region
      $region9: #{tpu_custom_call.1} parent=5 // pred_check
        _
      $region10: #{tpu_custom_call.1} parent=5 // pred_check_branch
        %191 = sbr.rel (%p188) target = $region12
      $region11: #{tpu_custom_call.1} parent=5 // pred_region
        %s192 = ssub.s32 %s17, 1
      $region12: #{tpu_custom_call.1} parent=5 // pred_fallthru
        _
      %p193 = scmp.lt.s32.totalorder %s17, 2
      // Predicated region
      $region13: #{tpu_custom_call.1} parent=5 // pred_check
        %p194 = pneg %p193
      $region14: #{tpu_custom_call.1} parent=5 // pred_check_branch
        %196 = sbr.rel (%p194) target = $region16
      $region15: #{tpu_custom_call.1} parent=5 // pred_region
        // Predicated region
        $region17: #{tpu_custom_call.1} parent=15 // pred_check
          %p197 = pneg %p58
        $region18: #{tpu_custom_call.1} parent=15 // pred_check_branch
          %199 = sbr.rel (%p197) target = $region20
        $region19: #{tpu_custom_call.1} parent=15 // pred_region
          %p200 = scmp.lt.s32.totalorder %s24, 1
          %s201 = scalar_select %p200, %s24, 1
          %p202 = scmp.lt.s32.totalorder %s25, 0
          %s203 = scalar_select %p202, %s25, 0
          %s204 = sadd.s32 %s203, %s201
          %s205 = smul.addr %s204, 4
          %s206 = scalar_lea.vmem %s0, %s205
        $region20: #{tpu_custom_call.1} parent=15 // pred_fallthru
          _
        // Predicated region
        $region21: #{tpu_custom_call.1} parent=15 // pred_check
          %p207 = pneg %p86
        $region22: #{tpu_custom_call.1} parent=15 // pred_check_branch
          %209 = sbr.rel (%p207) target = $region24
        $region23: #{tpu_custom_call.1} parent=15 // pred_region
          %s210 = smul.u32 16, %s26
          %p211 = scmp.lt.s32.totalorder %s24, 1
          %s212 = scalar_select %p211, %s24, 1
          %p213 = scmp.lt.s32.totalorder %s210, 15
          %s214 = scalar_select %p213, %s210, 15
          %s215 = smul.addr %s212, 16
          %s216 = sadd.s32 %s214, %s215
          %s217 = smul.addr %s216, 8
          %s218 = scalar_lea.vmem %s1, %s217
          %s219 = smul.u32 16, %s26
        $region24: #{tpu_custom_call.1} parent=15 // pred_fallthru
          _
      $region16: #{tpu_custom_call.1} parent=5 // pred_fallthru
        _
      %p220 = scmp.le.s32.totalorder 1, %s17
      %p221 = scmp.lt.s32.totalorder %s17, 3
      %p222 = pnand %p220, %p221
      %p223 = pneg %p222
      // Predicated region
      $region25: #{tpu_custom_call.1} parent=5 // pred_check
        _
      $region26: #{tpu_custom_call.1} parent=5 // pred_check_branch
        %225 = sbr.rel (%p222) target = $region28
      $region27: #{tpu_custom_call.1} parent=5 // pred_region
        %s226 = ssub.s32 %s17, 1
        %p227 = scmp.lt.s32.totalorder %s27, 1
        %s228 = scalar_select %p227, %s27, 1
        %p229 = scmp.lt.s32.totalorder %s28, 0
        %s230 = scalar_select %p229, %s28, 0
        %s231 = sadd.s32 %s230, %s228
        %s232 = smul.addr %s231, 4
        %s233 = scalar_lea.vmem %s0, %s232
        %p234 = pneg %p64
        %p235 = pneg %p61
        %s236 = smul.u32 16, %s29
        %p237 = scmp.lt.s32.totalorder %s27, 1
        %s238 = scalar_select %p237, %s27, 1
        %p239 = scmp.lt.s32.totalorder %s236, 15
        %s240 = scalar_select %p239, %s236, 15
        %s241 = smul.addr %s238, 16
        %s242 = sadd.s32 %s240, %s241
        %s243 = smul.addr %s242, 8
        %s244 = scalar_lea.vmem %s1, %s243
        %p245 = pneg %p92
        %p246 = pneg %p89
        %p247 = pneg %p120
        %p248 = pneg %p117
        %s249 = sand.u32 %s107, 1
        %s250 = scalar_lea.sflag [#allocation3], %s249
        %s251 = sand.u32 %s107, 1
        %s252 = scalar_lea.vmem [#allocation2], %s251
        %p253 = pneg %p148
        %p254 = pneg %p145
        %s255 = sand.u32 %s135, 1
        %s256 = scalar_lea.sflag [#allocation5], %s255
        %s257 = sand.u32 %s135, 1
        %s258 = scalar_lea.vmem [#allocation4], %s257
        %p259 = pneg %p178
        %p260 = pneg %p175
        %s261 = smul.u32 16, %s29
        %p262 = scmp.lt.s32.totalorder %s27, 1
        %s263 = scalar_select %p262, %s27, 1
        %p264 = scmp.lt.s32.totalorder %s28, 0
        %s265 = scalar_select %p264, %s28, 0
        %p266 = scmp.lt.s32.totalorder %s261, 15
        %s267 = scalar_select %p266, %s261, 15
        %s268 = smul.addr %s265, 16
        %s269 = sadd.s32 %s267, %s268
        %s270 = smul.addr %s263, 16
        %s271 = sadd.s32 %s269, %s270
        %s272 = smul.addr %s271, 8
        %s273 = scalar_lea.vmem %s4, %s272
        %p274 = scmp.lt.s32.totalorder %s27, 1
        %s275 = scalar_select %p274, %s27, 1
        %p276 = scmp.lt.s32.totalorder %s28, 0
        %s277 = scalar_select %p276, %s28, 0
        %s278 = sadd.s32 %s277, %s275
        %s279 = smul.addr %s278, 4
        %s280 = scalar_lea.vmem %s0, %s279
        %s281 = smul.u32 16, %s29
        %p282 = scmp.lt.s32.totalorder %s27, 1
        %s283 = scalar_select %p282, %s27, 1
        %p284 = scmp.lt.s32.totalorder %s281, 15
        %s285 = scalar_select %p284, %s281, 15
        %s286 = smul.addr %s283, 16
        %s287 = sadd.s32 %s285, %s286
        %s288 = smul.addr %s287, 8
        %s289 = scalar_lea.vmem %s1, %s288
        %s290 = smul.u32 16, %s29
        %s291 = smul.u32 16, %s29
        %p292 = scmp.lt.s32.totalorder %s27, 1
        %s293 = scalar_select %p292, %s27, 1
        %p294 = scmp.lt.s32.totalorder %s28, 0
        %s295 = scalar_select %p294, %s28, 0
        %p296 = scmp.lt.s32.totalorder %s291, 15
        %s297 = scalar_select %p296, %s291, 15
        %s298 = smul.addr %s295, 16
        %s299 = sadd.s32 %s297, %s298
        %s300 = smul.addr %s293, 16
        %s301 = sadd.s32 %s299, %s300
        %s302 = smul.addr %s301, 8
        %s303 = scalar_lea.vmem %s4, %s302
        %s304 = smul.u32 16, %s29
        %p305 = scmp.eq.s32.totalorder %s29, 0
        // Predicated region
        $region29: #{tpu_custom_call.1} parent=27 // pred_check
          %p306 = pneg %p305
        $region30: #{tpu_custom_call.1} parent=27 // pred_check_branch
          %308 = sbr.rel (%p306) target = $region32
        $region31: #{tpu_custom_call.1} parent=27 // pred_region
          %309 = vst [vmem:[%s252] sm:$0x1] inf
          %310 = vst [vmem:[%s258] sm:$0x1] 0
        $region32: #{tpu_custom_call.1} parent=27 // pred_fallthru
          _
        %v311 = vld [vmem:[%s289] sm:$0xff]
        %v312 = vld [vmem:[%s289 + $0x8] sm:$0xff]
        %v313 = vld [vmem:[%s289 + $0x10] sm:$0xff]
        %v314 = vld [vmem:[%s289 + $0x18] sm:$0xff]
        %v315 = vld [vmem:[%s289 + $0x20] sm:$0xff]
        %v316 = vld [vmem:[%s289 + $0x28] sm:$0xff]
        %v317 = vld [vmem:[%s289 + $0x30] sm:$0xff]
        %v318 = vld [vmem:[%s289 + $0x38] sm:$0xff]
        %v319 = vld [vmem:[%s289 + $0x40] sm:$0xff]
        %v320 = vld [vmem:[%s289 + $0x48] sm:$0xff]
        %v321 = vld [vmem:[%s289 + $0x50] sm:$0xff]
        %v322 = vld [vmem:[%s289 + $0x58] sm:$0xff]
        %v323 = vld [vmem:[%s289 + $0x60] sm:$0xff]
        %v324 = vld [vmem:[%s289 + $0x68] sm:$0xff]
        %v325 = vld [vmem:[%s289 + $0x70] sm:$0xff]
        %v326 = vld [vmem:[%s289 + $0x78] sm:$0xff]
        %v327 = vld [vmem:[%s280] sm:$0x1]
        %329 = vset.pattern.permute.xlu0 0
        %330 = vperm.xlu0 %329, %v311
        %v331 = vpop.permute.xlu0 %330
        %334 = vset.pattern.permute.xlu0 0
        %335 = vperm.xlu0 %334, %v312
        %v336 = vpop.permute.xlu0 %335
        %339 = vset.pattern.permute.xlu0 0
        %340 = vperm.xlu0 %339, %v313
        %v341 = vpop.permute.xlu0 %340
        %344 = vset.pattern.permute.xlu0 0
        %345 = vperm.xlu0 %344, %v314
        %v346 = vpop.permute.xlu0 %345
        %349 = vset.pattern.permute.xlu0 0
        %350 = vperm.xlu0 %349, %v315
        %v351 = vpop.permute.xlu0 %350
        %354 = vset.pattern.permute.xlu0 0
        %355 = vperm.xlu0 %354, %v316
        %v356 = vpop.permute.xlu0 %355
        %359 = vset.pattern.permute.xlu0 0
        %360 = vperm.xlu0 %359, %v317
        %v361 = vpop.permute.xlu0 %360
        %364 = vset.pattern.permute.xlu0 0
        %365 = vperm.xlu0 %364, %v318
        %v366 = vpop.permute.xlu0 %365
        %369 = vset.pattern.permute.xlu0 0
        %370 = vperm.xlu0 %369, %v319
        %v371 = vpop.permute.xlu0 %370
        %374 = vset.pattern.permute.xlu0 0
        %375 = vperm.xlu0 %374, %v320
        %v376 = vpop.permute.xlu0 %375
        %379 = vset.pattern.permute.xlu0 0
        %380 = vperm.xlu0 %379, %v321
        %v381 = vpop.permute.xlu0 %380
        %384 = vset.pattern.permute.xlu0 0
        %385 = vperm.xlu0 %384, %v322
        %v386 = vpop.permute.xlu0 %385
        %389 = vset.pattern.permute.xlu0 0
        %390 = vperm.xlu0 %389, %v323
        %v391 = vpop.permute.xlu0 %390
        %394 = vset.pattern.permute.xlu0 0
        %395 = vperm.xlu0 %394, %v324
        %v396 = vpop.permute.xlu0 %395
        %399 = vset.pattern.permute.xlu0 0
        %400 = vperm.xlu0 %399, %v325
        %v401 = vpop.permute.xlu0 %400
        %404 = vset.pattern.permute.xlu0 0
        %405 = vperm.xlu0 %404, %v326
        %v406 = vpop.permute.xlu0 %405
        %v408 = vlaneseq
        %v409 = vshrl.u32 %v408, 7
        %v410 = vsub.s32 0, %v409
        %v411 = vrot.slane %v327, %v410
        %v412 = vsub.f32 %v331, %v411
        %v413 = vsub.f32 %v336, %v411
        %v414 = vsub.f32 %v341, %v411
        %v415 = vsub.f32 %v346, %v411
        %v416 = vsub.f32 %v351, %v411
        %v417 = vsub.f32 %v356, %v411
        %v418 = vsub.f32 %v361, %v411
        %v419 = vsub.f32 %v366, %v411
        %v420 = vsub.f32 %v371, %v411
        %v421 = vsub.f32 %v376, %v411
        %v422 = vsub.f32 %v381, %v411
        %v423 = vsub.f32 %v386, %v411
        %v424 = vsub.f32 %v391, %v411
        %v425 = vsub.f32 %v396, %v411
        %v426 = vsub.f32 %v401, %v411
        %v427 = vsub.f32 %v406, %v411
        %v428 = vand.u32 2147483647, %v412
        %v429 = vand.u32 2147483647, %v413
        %v430 = vand.u32 2147483647, %v414
        %v431 = vand.u32 2147483647, %v415
        %v432 = vand.u32 2147483647, %v416
        %v433 = vand.u32 2147483647, %v417
        %v434 = vand.u32 2147483647, %v418
        %v435 = vand.u32 2147483647, %v419
        %v436 = vand.u32 2147483647, %v420
        %v437 = vand.u32 2147483647, %v421
        %v438 = vand.u32 2147483647, %v422
        %v439 = vand.u32 2147483647, %v423
        %v440 = vand.u32 2147483647, %v424
        %v441 = vand.u32 2147483647, %v425
        %v442 = vand.u32 2147483647, %v426
        %v443 = vand.u32 2147483647, %v427
        %v444 = vld [vmem:[%s280 + $0x1] sm:$0x1]
        %445 = vset.pattern.permute.xlu0 1
        %446 = vperm.xlu0 %445, %v311
        %v447 = vpop.permute.xlu0 %446
        %449 = vset.pattern.permute.xlu0 1
        %450 = vperm.xlu0 %449, %v312
        %v451 = vpop.permute.xlu0 %450
        %453 = vset.pattern.permute.xlu0 1
        %454 = vperm.xlu0 %453, %v313
        %v455 = vpop.permute.xlu0 %454
        %457 = vset.pattern.permute.xlu0 1
        %458 = vperm.xlu0 %457, %v314
        %v459 = vpop.permute.xlu0 %458
        %461 = vset.pattern.permute.xlu0 1
        %462 = vperm.xlu0 %461, %v315
        %v463 = vpop.permute.xlu0 %462
        %465 = vset.pattern.permute.xlu0 1
        %466 = vperm.xlu0 %465, %v316
        %v467 = vpop.permute.xlu0 %466
        %469 = vset.pattern.permute.xlu0 1
        %470 = vperm.xlu0 %469, %v317
        %v471 = vpop.permute.xlu0 %470
        %473 = vset.pattern.permute.xlu0 1
        %474 = vperm.xlu0 %473, %v318
        %v475 = vpop.permute.xlu0 %474
        %477 = vset.pattern.permute.xlu0 1
        %478 = vperm.xlu0 %477, %v319
        %v479 = vpop.permute.xlu0 %478
        %481 = vset.pattern.permute.xlu0 1
        %482 = vperm.xlu0 %481, %v320
        %v483 = vpop.permute.xlu0 %482
        %485 = vset.pattern.permute.xlu0 1
        %486 = vperm.xlu0 %485, %v321
        %v487 = vpop.permute.xlu0 %486
        %489 = vset.pattern.permute.xlu0 1
        %490 = vperm.xlu0 %489, %v322
        %v491 = vpop.permute.xlu0 %490
        %493 = vset.pattern.permute.xlu0 1
        %494 = vperm.xlu0 %493, %v323
        %v495 = vpop.permute.xlu0 %494
        %497 = vset.pattern.permute.xlu0 1
        %498 = vperm.xlu0 %497, %v324
        %v499 = vpop.permute.xlu0 %498
        %501 = vset.pattern.permute.xlu0 1
        %502 = vperm.xlu0 %501, %v325
        %v503 = vpop.permute.xlu0 %502
        %505 = vset.pattern.permute.xlu0 1
        %506 = vperm.xlu0 %505, %v326
        %v507 = vpop.permute.xlu0 %506
        %v509 = vlaneseq
        %v510 = vshrl.u32 %v509, 7
        %v511 = vsub.s32 0, %v510
        %v512 = vrot.slane %v444, %v511
        %v513 = vsub.f32 %v447, %v512
        %v514 = vsub.f32 %v451, %v512
        %v515 = vsub.f32 %v455, %v512
        %v516 = vsub.f32 %v459, %v512
        %v517 = vsub.f32 %v463, %v512
        %v518 = vsub.f32 %v467, %v512
        %v519 = vsub.f32 %v471, %v512
        %v520 = vsub.f32 %v475, %v512
        %v521 = vsub.f32 %v479, %v512
        %v522 = vsub.f32 %v483, %v512
        %v523 = vsub.f32 %v487, %v512
        %v524 = vsub.f32 %v491, %v512
        %v525 = vsub.f32 %v495, %v512
        %v526 = vsub.f32 %v499, %v512
        %v527 = vsub.f32 %v503, %v512
        %v528 = vsub.f32 %v507, %v512
        %v529 = vand.u32 2147483647, %v513
        %v530 = vand.u32 2147483647, %v514
        %v531 = vand.u32 2147483647, %v515
        %v532 = vand.u32 2147483647, %v516
        %v533 = vand.u32 2147483647, %v517
        %v534 = vand.u32 2147483647, %v518
        %v535 = vand.u32 2147483647, %v519
        %v536 = vand.u32 2147483647, %v520
        %v537 = vand.u32 2147483647, %v521
        %v538 = vand.u32 2147483647, %v522
        %v539 = vand.u32 2147483647, %v523
        %v540 = vand.u32 2147483647, %v524
        %v541 = vand.u32 2147483647, %v525
        %v542 = vand.u32 2147483647, %v526
        %v543 = vand.u32 2147483647, %v527
        %v544 = vand.u32 2147483647, %v528
        %v545 = vadd.f32 %v428, %v529
        %v546 = vadd.f32 %v429, %v530
        %v547 = vadd.f32 %v430, %v531
        %v548 = vadd.f32 %v431, %v532
        %v549 = vadd.f32 %v432, %v533
        %v550 = vadd.f32 %v433, %v534
        %v551 = vadd.f32 %v434, %v535
        %v552 = vadd.f32 %v435, %v536
        %v553 = vadd.f32 %v436, %v537
        %v554 = vadd.f32 %v437, %v538
        %v555 = vadd.f32 %v438, %v539
        %v556 = vadd.f32 %v439, %v540
        %v557 = vadd.f32 %v440, %v541
        %v558 = vadd.f32 %v441, %v542
        %v559 = vadd.f32 %v442, %v543
        %v560 = vadd.f32 %v443, %v544
        %v561 = vld [vmem:[%s280 + $0x2] sm:$0x1]
        %562 = vset.pattern.permute.xlu0 2
        %563 = vperm.xlu0 %562, %v311
        %v564 = vpop.permute.xlu0 %563
        %566 = vset.pattern.permute.xlu0 2
        %567 = vperm.xlu0 %566, %v312
        %v568 = vpop.permute.xlu0 %567
        %570 = vset.pattern.permute.xlu0 2
        %571 = vperm.xlu0 %570, %v313
        %v572 = vpop.permute.xlu0 %571
        %574 = vset.pattern.permute.xlu0 2
        %575 = vperm.xlu0 %574, %v314
        %v576 = vpop.permute.xlu0 %575
        %578 = vset.pattern.permute.xlu0 2
        %579 = vperm.xlu0 %578, %v315
        %v580 = vpop.permute.xlu0 %579
        %582 = vset.pattern.permute.xlu0 2
        %583 = vperm.xlu0 %582, %v316
        %v584 = vpop.permute.xlu0 %583
        %586 = vset.pattern.permute.xlu0 2
        %587 = vperm.xlu0 %586, %v317
        %v588 = vpop.permute.xlu0 %587
        %590 = vset.pattern.permute.xlu0 2
        %591 = vperm.xlu0 %590, %v318
        %v592 = vpop.permute.xlu0 %591
        %594 = vset.pattern.permute.xlu0 2
        %595 = vperm.xlu0 %594, %v319
        %v596 = vpop.permute.xlu0 %595
        %598 = vset.pattern.permute.xlu0 2
        %599 = vperm.xlu0 %598, %v320
        %v600 = vpop.permute.xlu0 %599
        %602 = vset.pattern.permute.xlu0 2
        %603 = vperm.xlu0 %602, %v321
        %v604 = vpop.permute.xlu0 %603
        %606 = vset.pattern.permute.xlu0 2
        %607 = vperm.xlu0 %606, %v322
        %v608 = vpop.permute.xlu0 %607
        %610 = vset.pattern.permute.xlu0 2
        %611 = vperm.xlu0 %610, %v323
        %v612 = vpop.permute.xlu0 %611
        %614 = vset.pattern.permute.xlu0 2
        %615 = vperm.xlu0 %614, %v324
        %v616 = vpop.permute.xlu0 %615
        %618 = vset.pattern.permute.xlu0 2
        %619 = vperm.xlu0 %618, %v325
        %v620 = vpop.permute.xlu0 %619
        %622 = vset.pattern.permute.xlu0 2
        %623 = vperm.xlu0 %622, %v326
        %v624 = vpop.permute.xlu0 %623
        %v626 = vlaneseq
        %v627 = vshrl.u32 %v626, 7
        %v628 = vsub.s32 0, %v627
        %v629 = vrot.slane %v561, %v628
        %v630 = vsub.f32 %v564, %v629
        %v631 = vsub.f32 %v568, %v629
        %v632 = vsub.f32 %v572, %v629
        %v633 = vsub.f32 %v576, %v629
        %v634 = vsub.f32 %v580, %v629
        %v635 = vsub.f32 %v584, %v629
        %v636 = vsub.f32 %v588, %v629
        %v637 = vsub.f32 %v592, %v629
        %v638 = vsub.f32 %v596, %v629
        %v639 = vsub.f32 %v600, %v629
        %v640 = vsub.f32 %v604, %v629
        %v641 = vsub.f32 %v608, %v629
        %v642 = vsub.f32 %v612, %v629
        %v643 = vsub.f32 %v616, %v629
        %v644 = vsub.f32 %v620, %v629
        %v645 = vsub.f32 %v624, %v629
        %v646 = vand.u32 2147483647, %v630
        %v647 = vand.u32 2147483647, %v631
        %v648 = vand.u32 2147483647, %v632
        %v649 = vand.u32 2147483647, %v633
        %v650 = vand.u32 2147483647, %v634
        %v651 = vand.u32 2147483647, %v635
        %v652 = vand.u32 2147483647, %v636
        %v653 = vand.u32 2147483647, %v637
        %v654 = vand.u32 2147483647, %v638
        %v655 = vand.u32 2147483647, %v639
        %v656 = vand.u32 2147483647, %v640
        %v657 = vand.u32 2147483647, %v641
        %v658 = vand.u32 2147483647, %v642
        %v659 = vand.u32 2147483647, %v643
        %v660 = vand.u32 2147483647, %v644
        %v661 = vand.u32 2147483647, %v645
        %v662 = vadd.f32 %v545, %v646
        %v663 = vadd.f32 %v546, %v647
        %v664 = vadd.f32 %v547, %v648
        %v665 = vadd.f32 %v548, %v649
        %v666 = vadd.f32 %v549, %v650
        %v667 = vadd.f32 %v550, %v651
        %v668 = vadd.f32 %v551, %v652
        %v669 = vadd.f32 %v552, %v653
        %v670 = vadd.f32 %v553, %v654
        %v671 = vadd.f32 %v554, %v655
        %v672 = vadd.f32 %v555, %v656
        %v673 = vadd.f32 %v556, %v657
        %v674 = vadd.f32 %v557, %v658
        %v675 = vadd.f32 %v558, %v659
        %v676 = vadd.f32 %v559, %v660
        %v677 = vadd.f32 %v560, %v661
        %678 = vmin.xlane.f32.xlu0 %v662
        %v679 = vpop.xlane.xlu0 %678
        %680 = vmin.xlane.f32.xlu0 %v663
        %v681 = vpop.xlane.xlu0 %680
        %682 = vmin.xlane.f32.xlu0 %v664
        %v683 = vpop.xlane.xlu0 %682
        %684 = vmin.xlane.f32.xlu0 %v665
        %v685 = vpop.xlane.xlu0 %684
        %686 = vmin.xlane.f32.xlu0 %v666
        %v687 = vpop.xlane.xlu0 %686
        %688 = vmin.xlane.f32.xlu0 %v667
        %v689 = vpop.xlane.xlu0 %688
        %690 = vmin.xlane.f32.xlu0 %v668
        %v691 = vpop.xlane.xlu0 %690
        %692 = vmin.xlane.f32.xlu0 %v669
        %v693 = vpop.xlane.xlu0 %692
        %694 = vmin.xlane.f32.xlu0 %v670
        %v695 = vpop.xlane.xlu0 %694
        %696 = vmin.xlane.f32.xlu0 %v671
        %v697 = vpop.xlane.xlu0 %696
        %698 = vmin.xlane.f32.xlu0 %v672
        %v699 = vpop.xlane.xlu0 %698
        %700 = vmin.xlane.f32.xlu0 %v673
        %v701 = vpop.xlane.xlu0 %700
        %702 = vmin.xlane.f32.xlu0 %v674
        %v703 = vpop.xlane.xlu0 %702
        %704 = vmin.xlane.f32.xlu0 %v675
        %v705 = vpop.xlane.xlu0 %704
        %706 = vmin.xlane.f32.xlu0 %v676
        %v707 = vpop.xlane.xlu0 %706
        %708 = vmin.xlane.f32.xlu0 %v677
        %v709 = vpop.xlane.xlu0 %708
        %vm710 = vcmask 7168
        %711 = vst.msk [vmem:[%s303] sm:$0xff] %vm710, %v679
        %712 = vst.msk [vmem:[%s303 + $0x8] sm:$0xff] %vm710, %v681
        %713 = vst.msk [vmem:[%s303 + $0x10] sm:$0xff] %vm710, %v683
        %714 = vst.msk [vmem:[%s303 + $0x18] sm:$0xff] %vm710, %v685
        %715 = vst.msk [vmem:[%s303 + $0x20] sm:$0xff] %vm710, %v687
        %716 = vst.msk [vmem:[%s303 + $0x28] sm:$0xff] %vm710, %v689
        %717 = vst.msk [vmem:[%s303 + $0x30] sm:$0xff] %vm710, %v691
        %718 = vst.msk [vmem:[%s303 + $0x38] sm:$0xff] %vm710, %v693
        %719 = vst.msk [vmem:[%s303 + $0x40] sm:$0xff] %vm710, %v695
        %720 = vst.msk [vmem:[%s303 + $0x48] sm:$0xff] %vm710, %v697
        %721 = vst.msk [vmem:[%s303 + $0x50] sm:$0xff] %vm710, %v699
        %722 = vst.msk [vmem:[%s303 + $0x58] sm:$0xff] %vm710, %v701
        %723 = vst.msk [vmem:[%s303 + $0x60] sm:$0xff] %vm710, %v703
        %724 = vst.msk [vmem:[%s303 + $0x68] sm:$0xff] %vm710, %v705
        %725 = vst.msk [vmem:[%s303 + $0x70] sm:$0xff] %vm710, %v707
        %726 = vst.msk [vmem:[%s303 + $0x78] sm:$0xff] %vm710, %v709
        %v727 = vmin.f32 %v662, %v666
        %v728 = vmin.f32 %v663, %v667
        %v729 = vmin.f32 %v664, %v668
        %v730 = vmin.f32 %v665, %v669
        %v731 = vmin.f32 %v727, %v670
        %v732 = vmin.f32 %v728, %v671
        %v733 = vmin.f32 %v729, %v672
        %v734 = vmin.f32 %v730, %v673
        %v735 = vmin.f32 %v731, %v674
        %v736 = vmin.f32 %v732, %v675
        %v737 = vmin.f32 %v733, %v676
        %v738 = vmin.f32 %v734, %v677
        %v739 = vmin.f32 %v735, %v736
        %v740 = vmin.f32 %v737, %v738
        %v741 = vmin.f32 %v739, %v740
        %v742 = vrot.slane %v741, 4
        %v743 = vmin.f32 %v741, %v742
        %v744 = vrot.slane %v743, 2
        %v745 = vmin.f32 %v743, %v744
        %v746 = vrot.slane %v745, 1
        %v747 = vmin.f32 %v745, %v746
        %v748 = vlaneseq
        %v749 = vshrl.u32 %v748, 7
        %v750 = vadd.s32 %v749, 8
        %v751 = vadd.s32 %v749, 16
        %v752 = vadd.s32 %v749, 24
        %v753 = vadd.s32 %v749, 32
        %v754 = vadd.s32 %v749, 40
        %v755 = vadd.s32 %v749, 48
        %v756 = vadd.s32 %v749, 56
        %v757 = vadd.s32 %v749, 64
        %v758 = vadd.s32 %v749, 72
        %v759 = vadd.s32 %v749, 80
        %v760 = vadd.s32 %v749, 88
        %v761 = vadd.s32 %v749, 96
        %v762 = vadd.s32 %v749, 104
        %v763 = vadd.s32 %v749, 112
        %v764 = vadd.s32 %v749, 120
        %vm765 = vcmp.le.f32.partialorder %v662, %v747
        %vm766 = vcmp.le.f32.partialorder %v663, %v747
        %vm767 = vcmp.le.f32.partialorder %v664, %v747
        %vm768 = vcmp.le.f32.partialorder %v665, %v747
        %vm769 = vcmp.le.f32.partialorder %v666, %v747
        %vm770 = vcmp.le.f32.partialorder %v667, %v747
        %vm771 = vcmp.le.f32.partialorder %v668, %v747
        %vm772 = vcmp.le.f32.partialorder %v669, %v747
        %vm773 = vcmp.le.f32.partialorder %v670, %v747
        %vm774 = vcmp.le.f32.partialorder %v671, %v747
        %vm775 = vcmp.le.f32.partialorder %v672, %v747
        %vm776 = vcmp.le.f32.partialorder %v673, %v747
        %vm777 = vcmp.le.f32.partialorder %v674, %v747
        %vm778 = vcmp.le.f32.partialorder %v675, %v747
        %vm779 = vcmp.le.f32.partialorder %v676, %v747
        %vm780 = vcmp.le.f32.partialorder %v677, %v747
        %v781 = vsel %vm765, %v749, 128
        %v782 = vsel %vm766, %v750, 128
        %v783 = vsel %vm767, %v751, 128
        %v784 = vsel %vm768, %v752, 128
        %v785 = vsel %vm769, %v753, 128
        %v786 = vsel %vm770, %v754, 128
        %v787 = vsel %vm771, %v755, 128
        %v788 = vsel %vm772, %v756, 128
        %v789 = vsel %vm773, %v757, 128
        %v790 = vsel %vm774, %v758, 128
        %v791 = vsel %vm775, %v759, 128
        %v792 = vsel %vm776, %v760, 128
        %v793 = vsel %vm777, %v761, 128
        %v794 = vsel %vm778, %v762, 128
        %v795 = vsel %vm779, %v763, 128
        %v796 = vsel %vm780, %v764, 128
        %vm797 = vcmp.lt.s32.totalorder %v781, %v785
        %v798 = vsel %vm797, %v781, %v785
        %vm799 = vcmp.lt.s32.totalorder %v782, %v786
        %v800 = vsel %vm799, %v782, %v786
        %vm801 = vcmp.lt.s32.totalorder %v783, %v787
        %v802 = vsel %vm801, %v783, %v787
        %vm803 = vcmp.lt.s32.totalorder %v784, %v788
        %v804 = vsel %vm803, %v784, %v788
        %vm805 = vcmp.lt.s32.totalorder %v798, %v789
        %v806 = vsel %vm805, %v798, %v789
        %vm807 = vcmp.lt.s32.totalorder %v800, %v790
        %v808 = vsel %vm807, %v800, %v790
        %vm809 = vcmp.lt.s32.totalorder %v802, %v791
        %v810 = vsel %vm809, %v802, %v791
        %vm811 = vcmp.lt.s32.totalorder %v804, %v792
        %v812 = vsel %vm811, %v804, %v792
        %vm813 = vcmp.lt.s32.totalorder %v806, %v793
        %v814 = vsel %vm813, %v806, %v793
        %vm815 = vcmp.lt.s32.totalorder %v808, %v794
        %v816 = vsel %vm815, %v808, %v794
        %vm817 = vcmp.lt.s32.totalorder %v810, %v795
        %v818 = vsel %vm817, %v810, %v795
        %vm819 = vcmp.lt.s32.totalorder %v812, %v796
        %v820 = vsel %vm819, %v812, %v796
        %vm821 = vcmp.lt.s32.totalorder %v814, %v816
        %v822 = vsel %vm821, %v814, %v816
        %vm823 = vcmp.lt.s32.totalorder %v818, %v820
        %v824 = vsel %vm823, %v818, %v820
        %vm825 = vcmp.lt.s32.totalorder %v822, %v824
        %v826 = vsel %vm825, %v822, %v824
        %v827 = vrot.slane %v826, 4
        %vm828 = vcmp.lt.s32.totalorder %v826, %v827
        %v829 = vsel %vm828, %v826, %v827
        %v830 = vrot.slane %v829, 2
        %vm831 = vcmp.lt.s32.totalorder %v829, %v830
        %v832 = vsel %vm831, %v829, %v830
        %v833 = vrot.slane %v832, 1
        %vm834 = vcmp.lt.s32.totalorder %v832, %v833
        %v835 = vsel %vm834, %v832, %v833
        %s836 = smul.u32 %s29, 128
        %v837 = vstv %s836
        %v838 = vadd.s32 %v835, %v837
        %v839 = vld [vmem:[%s252] sm:$0x1]
        %vm840 = vcmp.lt.f32.partialorder %v747, %v839
        %v841 = vld [vmem:[%s258] sm:$0x1]
        %v842 = vsel %vm840, %v838, %v841
        %843 = vst [vmem:[%s258] sm:$0x1] %v842
        %v844 = vld [vmem:[%s252] sm:$0x1]
        %v845 = vsel %vm840, %v747, %v844
        %846 = vst [vmem:[%s252] sm:$0x1] %v845
        %s847 = sand.u32 %s107, 1
        %s848 = scalar_lea.sflag [#allocation3], %s847
        %s849 = sand.u32 %s107, 1
        %s850 = scalar_lea.vmem [#allocation2], %s849
        %s851 = sand.u32 %s135, 1
        %s852 = scalar_lea.sflag [#allocation5], %s851
        %s853 = sand.u32 %s135, 1
        %s854 = scalar_lea.vmem [#allocation4], %s853
        %s855 = smul.u32 16, %s29
        %p856 = scmp.lt.s32.totalorder %s27, 1
        %s857 = scalar_select %p856, %s27, 1
        %p858 = scmp.lt.s32.totalorder %s28, 0
        %s859 = scalar_select %p858, %s28, 0
        %p860 = scmp.lt.s32.totalorder %s855, 15
        %s861 = scalar_select %p860, %s855, 15
        %s862 = smul.addr %s859, 16
        %s863 = sadd.s32 %s861, %s862
        %s864 = smul.addr %s857, 16
        %s865 = sadd.s32 %s863, %s864
        %s866 = smul.addr %s865, 8
        %s867 = scalar_lea.vmem %s4, %s866
        // Predicated region
        $region33: #{tpu_custom_call.1} parent=27 // pred_check
          %p868 = pneg %p117
        $region34: #{tpu_custom_call.1} parent=27 // pred_check_branch
          %870 = sbr.rel (%p868) target = $region36
        $region35: #{tpu_custom_call.1} parent=27 // pred_region
          %s872 = ssub.s32 16, 16
          %873 = vsyncadd %s848, %s872
          %s874 = sadd.s32 %s28, %s27
          %s875 = smul.addr %s874, 16
          %s876 = scalar_lea.hbm %s2, %s875
          %s878 = sshll.u32 %s850, 4
          %s879 = int_to_ptr.vmem [resolvable:$true] %s878
          %881 = dma.vmem_to_hbm [thread:$0]  %s879, 16, %s876, %s848
        $region36: #{tpu_custom_call.1} parent=27 // pred_fallthru
          _
        // Predicated region
        $region37: #{tpu_custom_call.1} parent=27 // pred_check
          %p882 = pneg %p145
        $region38: #{tpu_custom_call.1} parent=27 // pred_check_branch
          %884 = sbr.rel (%p882) target = $region40
        $region39: #{tpu_custom_call.1} parent=27 // pred_region
          %s886 = ssub.s32 16, 16
          %887 = vsyncadd %s852, %s886
          %s888 = sadd.s32 %s28, %s27
          %s889 = smul.addr %s888, 16
          %s890 = scalar_lea.hbm %s3, %s889
          %s892 = sshll.u32 %s854, 4
          %s893 = int_to_ptr.vmem [resolvable:$true] %s892
          %895 = dma.vmem_to_hbm [thread:$0]  %s893, 16, %s890, %s852
        $region40: #{tpu_custom_call.1} parent=27 // pred_fallthru
          _
        // Predicated region
        $region41: #{tpu_custom_call.1} parent=27 // pred_check
          %p896 = pneg %p175
        $region42: #{tpu_custom_call.1} parent=27 // pred_check_branch
          %898 = sbr.rel (%p896) target = $region44
        $region43: #{tpu_custom_call.1} parent=27 // pred_region
          %s899 = smul.u32 16, %s29
        $region44: #{tpu_custom_call.1} parent=27 // pred_fallthru
          _
      $region28: #{tpu_custom_call.1} parent=5 // pred_fallthru
        _
      %p900 = scmp.le.s32.totalorder 2, %s17
      // Predicated region
      $region45: #{tpu_custom_call.1} parent=5 // pred_check
        %p901 = pneg %p900
      $region46: #{tpu_custom_call.1} parent=5 // pred_check_branch
        %903 = sbr.rel (%p901) target = $region48
      $region47: #{tpu_custom_call.1} parent=5 // pred_region
        %s904 = ssub.s32 %s17, 2
        // Predicated region
        $region49: #{tpu_custom_call.1} parent=47 // pred_check
          %p905 = pneg %p123
        $region50: #{tpu_custom_call.1} parent=47 // pred_check_branch
          %907 = sbr.rel (%p905) target = $region52
        $region51: #{tpu_custom_call.1} parent=47 // pred_region
          %s908 = sand.u32 %s108, 1
          %s909 = scalar_lea.sflag [#allocation3], %s908
          %s910 = sand.u32 %s108, 1
          %s911 = scalar_lea.vmem [#allocation2], %s910
          %912 = dma.done %s909, 16
        $region52: #{tpu_custom_call.1} parent=47 // pred_fallthru
          _
        // Predicated region
        $region53: #{tpu_custom_call.1} parent=47 // pred_check
          %p913 = pneg %p151
        $region54: #{tpu_custom_call.1} parent=47 // pred_check_branch
          %915 = sbr.rel (%p913) target = $region56
        $region55: #{tpu_custom_call.1} parent=47 // pred_region
          %s916 = sand.u32 %s136, 1
          %s917 = scalar_lea.sflag [#allocation5], %s916
          %s918 = sand.u32 %s136, 1
          %s919 = scalar_lea.vmem [#allocation4], %s918
          %920 = dma.done %s917, 16
        $region56: #{tpu_custom_call.1} parent=47 // pred_fallthru
          _
        // Predicated region
        $region57: #{tpu_custom_call.1} parent=47 // pred_check
          %p921 = pneg %p181
        $region58: #{tpu_custom_call.1} parent=47 // pred_check_branch
          %923 = sbr.rel (%p921) target = $region60
        $region59: #{tpu_custom_call.1} parent=47 // pred_region
          %s924 = smul.u32 16, %s32
          %p925 = scmp.lt.s32.totalorder %s30, 1
          %s926 = scalar_select %p925, %s30, 1
          %p927 = scmp.lt.s32.totalorder %s31, 0
          %s928 = scalar_select %p927, %s31, 0
          %p929 = scmp.lt.s32.totalorder %s924, 15
          %s930 = scalar_select %p929, %s924, 15
          %s931 = smul.addr %s928, 16
          %s932 = sadd.s32 %s930, %s931
          %s933 = smul.addr %s926, 16
          %s934 = sadd.s32 %s932, %s933
          %s935 = smul.addr %s934, 8
          %s936 = scalar_lea.vmem %s4, %s935
        $region60: #{tpu_custom_call.1} parent=47 // pred_fallthru
          _
      $region48: #{tpu_custom_call.1} parent=5 // pred_fallthru
        _
    $region6: #{tpu_custom_call.1} parent=1 // loop_footer
      %s21 = sadd.s32 1, %s17
    $region7: #{tpu_custom_call.1} parent=1 // loop_footer_branch
      %16 = sbr.rel target = $region3
    $region8: #{tpu_custom_call.1} parent=1 // loop_exit
      _
    %937 = vsyncpa [#allocation3], 1
    %s938 = scalar_lea.sflag [#allocation3], 1
    %939 = vsyncpa %s938, 1
    %940 = vsyncpa [#allocation5], 1
    %s941 = scalar_lea.sflag [#allocation5], 1
    %942 = vsyncpa %s941, 1

</llo_original>
